<compile_context>
chip_gen: v5e
topology: v5e:2x2
jax: 0.10.0
libtpu: 0.0.40
codegen_flags: <defaults>
</compile_context>

<pallas_src>
import functools

import jax
import jax.numpy as jnp
import numpy as np
from jax.experimental import pallas as pl
from jax.experimental.pallas import tpu as pltpu

BN_EPS = 1e-5


def pooled_conv_kernel(x_ref, w1_ref, b1_ref, out_ref, acc_ref, *,
                       p_total, tp, n_p_inner, needs_mask):
    """1x1 conv (+ folded eval-BN) -> ReLU -> partial global-avg-pool sums.

    x_ref:  [1, C_in, tp]  bf16  one batch element, P-tile on the lanes
    w1_ref: [C, C_in]      bf16  conv weight with eval-BN scale folded in
    b1_ref: [C, 1]         f32   fused conv + BN bias
    out_ref:[1, 1, C, 1]   f32   pooled *sums* for this (batch, split)
    acc_ref:[C, 1]         f32   running pooled sums (VMEM scratch)
    """
    j = pl.program_id(2)

    @pl.when(j == 0)
    def _init():
        acc_ref[...] = jnp.zeros_like(acc_ref)

    # 1x1 conv as a matmul on the MXU: [C, C_in] @ [C_in, tp] -> [C, tp].
    # bf16 operands, f32 accumulation.
    h = jnp.dot(w1_ref[...], x_ref[0], preferred_element_type=jnp.float32)
    h = jnp.maximum(h + b1_ref[...], 0.0)              # bias + ReLU (f32 VPU)

    if needs_mask:
        # Zero lanes past the end of P (ragged last tile / fully-empty tiles
        # of the last split). Matmul columns are independent, so stale data in
        # padded lanes cannot contaminate valid ones.
        sp = pl.program_id(1)
        start = (sp * n_p_inner + j) * tp
        lane = jax.lax.broadcasted_iota(jnp.int32, h.shape, 1)
        h = jnp.where(lane < (p_total - start), h, 0.0)

    # Partial global-average-pool: accumulate sums over this P tile.
    acc_ref[...] += jnp.sum(h, axis=1, keepdims=True)   # [C, 1]

    @pl.when(j == pl.num_programs(2) - 1)
    def _store():
        out_ref[0, 0] = acc_ref[...]


def linear_kernel(p_ref, w_ref, b_ref, o_ref):
    """Final Linear over the (tiny) pooled features; all batches in one pass.

    p_ref: [N, C] pooled sums; w_ref: [C, C] = (w2 / P).T; b_ref: [1, C].
    """
    o_ref[...] = (jnp.dot(p_ref[...], w_ref[...],
                          preferred_element_type=jnp.float32)
                  + b_ref[...]).astype(o_ref.dtype)


def _choose_tp(P, c_in, itemsize, max_tile_bytes):
    """Largest multiple-of-128 P-tile within the byte cap.

    Decoupled from P's factorization; the ragged tail is masked in-kernel.
    """
    bytes_per_col = itemsize * c_in
    cap = max(128, (max_tile_bytes // bytes_per_col) // 128 * 128)
    if P <= cap:
        return P          # single full-extent tile (always a legal block dim)
    return cap


def cls_head_forward(x_nchw, params, *, tp=None, n_split=None,
                     max_tile_bytes=8 << 20):
    """x_nchw: [N, C_in, H, W] float32. Returns [N, cls]."""
    N, C_in, H, W = x_nchw.shape
    C = params["w1"].shape[0]            # cls
    P = H * W

    # NCHW is already lane-friendly: [N, C_in, P] puts the big P axis on the
    # 128-lane dim. Stream activations as bf16 (halves HBM traffic).
    x = x_nchw.reshape(N, C_in, P).astype(jnp.bfloat16)

    # --- One-time constant folds (exact affine rewrites) --------------------
    w1 = params["w1"].reshape(C, C_in)
    bn_scale = params["gamma"] * jax.lax.rsqrt(params["running_var"] + BN_EPS)
    w1_fused = (w1 * bn_scale[:, None]).astype(jnp.bfloat16)        # [C, C_in]
    b1_fused = ((params["b1"] - params["running_mean"]) * bn_scale
                + params["beta"]).astype(jnp.float32)[:, None]      # [C, 1]
    # 1/P folded into the linear weight (streaming kernel emits pooled sums).
    w2t_scaled = (params["w2"] * (1.0 / float(P))).T.astype(jnp.float32)
    b2_row = params["b2"].astype(jnp.float32)[None, :]              # [1, C]

    # --- Tiling --------------------------------------------------------------
    if tp is None:
        tp = _choose_tp(P, C_in, 2, max_tile_bytes)     # 2 bytes/elem (bf16)
    assert tp == P or tp % 128 == 0, (P, tp)
    n_p_total = pl.cdiv(P, tp)

    # Split the P reduction into independent partial sums so both v7x
    # TensorCores get work when N alone can't fill them (N == 1 or odd).
    if n_split is None:
        n_split = 2 if (N % 2 == 1) else 1
    n_split = max(1, min(n_split, n_p_total))
    n_p_inner = pl.cdiv(n_p_total, n_split)
    needs_mask = (n_split * n_p_inner * tp) != P

    # VMEM budget computed from the actual operands (double-buffered x / out /
    # constants + accumulator scratch), clamped to [32 MiB, 64 MiB (v7x phys)].
    x_tile_bytes = 2 * C_in * tp                        # bf16
    const_bytes = 2 * C * C_in + 4 * C                  # w1 (bf16) + b1 (f32)
    out_blk_bytes = 4 * C
    vmem_needed = 2 * (x_tile_bytes + const_bytes + out_blk_bytes) + 4 * C
    vmem_limit = int(min(max(vmem_needed + (4 << 20), 32 << 20), 64 << 20))

    if n_split * n_p_inner > n_p_total:
        # Last split has fully-empty tiles: clamp the block index (the DMA
        # stays in bounds; the kernel masks their contribution to zero).
        x_index_map = lambda i, sp, j: (
            i, 0, jnp.minimum(sp * n_p_inner + j, n_p_total - 1))
    else:
        x_index_map = lambda i, sp, j: (i, 0, sp * n_p_inner + j)

    kernel = functools.partial(pooled_conv_kernel, p_total=P, tp=tp,
                               n_p_inner=n_p_inner, needs_mask=needs_mask)

    partial_sums = pl.pallas_call(
        kernel,
        out_shape=jax.ShapeDtypeStruct((N, n_split, C, 1), jnp.float32),
        grid=(N, n_split, n_p_inner),
        in_specs=[
            pl.BlockSpec((1, C_in, tp), x_index_map),              # x stream
            pl.BlockSpec((C, C_in), lambda i, sp, j: (0, 0)),      # fused w1
            pl.BlockSpec((C, 1), lambda i, sp, j: (0, 0)),         # fused b1
        ],
        out_specs=pl.BlockSpec((1, 1, C, 1), lambda i, sp, j: (i, sp, 0, 0)),
        scratch_shapes=[pltpu.VMEM((C, 1), jnp.float32)],
        compiler_params=pltpu.CompilerParams(
            dimension_semantics=("parallel", "parallel", "arbitrary"),
            vmem_limit_bytes=vmem_limit),
    )(x, w1_fused, b1_fused)

    # Combine split partials (tiny elementwise add) and apply the Linear with
    # all batches sharing one MXU pass.
    pooled_sums = jnp.sum(partial_sums[..., 0], axis=1)             # [N, C]
    out = pl.pallas_call(
        linear_kernel,
        out_shape=jax.ShapeDtypeStruct((N, C), jnp.float32),
    )(pooled_sums, w2t_scaled, b2_row)
    return out                                                       # [N, C]


def reference_forward(x_nchw, params):
    """Pure-JAX f32 reference mirroring the PyTorch eval-mode forward."""
    N, C_in, H, W = x_nchw.shape
    C = params["w1"].shape[0]
    x = jnp.transpose(x_nchw, (0, 2, 3, 1)).reshape(N * H * W, C_in)
    h = x @ params["w1"].reshape(C, C_in).T + params["b1"]
    h = (h - params["running_mean"]) / jnp.sqrt(params["running_var"] + BN_EPS)
    h = h * params["gamma"] + params["beta"]
    h = jnp.maximum(h, 0.0).reshape(N, H * W, C)
    pooled = jnp.mean(h, axis=1)
    return pooled @ params["w2"].T + params["b2"]


def init_params(key, linear_in, cls):
    ks = jax.random.split(key, 6)
    # Conv2d(linear_in, cls, 1x1)
    w1 = jax.random.normal(ks[0], (cls, linear_in, 1, 1), jnp.float32) * 0.1
    b1 = jax.random.normal(ks[1], (cls,), jnp.float32) * 0.1
    # BatchNorm2d(cls) -- eval-mode running stats (synthetic, deterministic)
    gamma = 1.0 + 0.1 * jax.random.normal(ks[2], (cls,), jnp.float32)
    beta = 0.1 * jax.random.normal(ks[3], (cls,), jnp.float32)
    running_mean = 0.05 * jnp.arange(cls, dtype=jnp.float32)
    running_var = 1.0 + 0.02 * jnp.arange(cls, dtype=jnp.float32)
    # Linear(cls, cls)
    w2 = jax.random.normal(ks[4], (cls, cls), jnp.float32) * 0.1
    b2 = jax.random.normal(ks[5], (cls,), jnp.float32) * 0.1
    return dict(w1=w1, b1=b1, gamma=gamma, beta=beta,
                running_mean=running_mean, running_var=running_var,
                w2=w2, b2=b2)


if __name__ == "__main__":
    key = jax.random.PRNGKey(0)
    k_x, k_x2, k_p = jax.random.split(key, 3)

    C_IN, CLS = 4, 8
    params = init_params(k_p, C_IN, CLS)

    # bf16 activation stream -> looser tolerances vs the f32 reference
    # (accumulation stays f32, so the result is sound but not bit-matched).
    RTOL, ATOL = 2e-2, 5e-3

    # Case A: batch=2, 16x16 spatial, auto tile (single P tile, no split).
    x = jax.random.normal(k_x, (2, C_IN, 16, 16), jnp.float32)
    ref = jax.block_until_ready(reference_forward(x, params))
    out = jax.block_until_ready(cls_head_forward(x, params))
    np.testing.assert_allclose(np.asarray(out), np.asarray(ref),
                               rtol=RTOL, atol=ATOL)
    assert out.shape == (2, CLS)

    # Case B: forced tp=128 -> multi-step P reduction (accumulator
    # init / accumulate / finalize path).
    out_b = jax.block_until_ready(cls_head_forward(x, params, tp=128))
    np.testing.assert_allclose(np.asarray(out_b), np.asarray(ref),
                               rtol=RTOL, atol=ATOL)

    # Case C: batch=1, ragged P (20*16 = 320, not a multiple of 128) with the
    # default 2-way reduction split: exercises lane masking, the clamped index
    # map (one fully-empty tile) and the partial-sum combine.
    x1 = jax.random.normal(k_x2, (1, C_IN, 20, 16), jnp.float32)
    ref1 = jax.block_until_ready(reference_forward(x1, params))
    out1 = jax.block_until_ready(cls_head_forward(x1, params, tp=128))
    np.testing.assert_allclose(np.asarray(out1), np.asarray(ref1),
                               rtol=RTOL, atol=ATOL)

    print("KERNEL_OK")
</pallas_src>

<mosaic_0001>
module attributes {stable_mosaic.version = 11 : i64} {
  func.func @pooled_conv_kernel(%arg0: i32, %arg1: i32, %arg2: i32, %arg3: memref<1x4x256xbf16, #tpu.memory_space<vmem>>, %arg4: memref<8x4xbf16, #tpu.memory_space<vmem>>, %arg5: memref<8x1xf32, #tpu.memory_space<vmem>>, %arg6: memref<1x1x8x1xf32, #tpu.memory_space<vmem>>, %arg7: memref<8x1xf32, #tpu.memory_space<vmem>>) attributes {dimension_semantics = [#tpu.dimension_semantics<parallel>, #tpu.dimension_semantics<parallel>, #tpu.dimension_semantics<arbitrary>], iteration_bounds = array<i64: 2, 1, 1>, scalar_prefetch = 0 : i64, scratch_operands = 1 : i64, tpu.core_type = #tpu.core_type<tc>, window_params = [{transform_indices = @transform_0, window_bounds = array<i64: 1, 4, 256>}, {pipeline_mode = #tpu.pipeline_mode<synchronous>, transform_indices = @transform_1, window_bounds = array<i64: 8, 4>}, {pipeline_mode = #tpu.pipeline_mode<synchronous>, transform_indices = @transform_2, window_bounds = array<i64: 8, 1>}, {transform_indices = @transform_3, window_bounds = array<i64: 1, 1, 8, 1>}]} {
    %c0_i32 = arith.constant 0 : i32
    %0 = arith.cmpi eq, %arg2, %c0_i32 : i32
    %1 = arith.extui %0 : i1 to i32
    %c0_i32_0 = arith.constant 0 : i32
    %2 = arith.cmpi ne, %1, %c0_i32_0 : i32
    scf.if %2 {
      %cst_15 = arith.constant 0.000000e+00 : f32
      %20 = vector.broadcast %cst_15 : f32 to vector<8x1xf32>
      %c0_16 = arith.constant 0 : index
      %c0_17 = arith.constant 0 : index
      %21 = vector.load %arg7[%c0_16, %c0_17] : memref<8x1xf32, #tpu.memory_space<vmem>>, vector<8x1xf32>
      tpu.vector_store %arg7[%c0_16, %c0_17], %20 {strides = array<i32>} : memref<8x1xf32, #tpu.memory_space<vmem>>, vector<8x1xf32>,
    } else {
    }
    %c0 = arith.constant 0 : index
    %c0_1 = arith.constant 0 : index
    %3 = vector.load %arg4[%c0, %c0_1] : memref<8x4xbf16, #tpu.memory_space<vmem>>, vector<8x4xbf16>
    %c0_2 = arith.constant 0 : index
    %c0_3 = arith.constant 0 : index
    %c0_4 = arith.constant 0 : index
    %4 = vector.load %arg3[%c0_2, %c0_3, %c0_4] : memref<1x4x256xbf16, #tpu.memory_space<vmem>>, vector<1x4x256xbf16>
    %5 = vector.shape_cast %4 : vector<1x4x256xbf16> to vector<4x256xbf16>
    %cst = arith.constant dense<0.000000e+00> : vector<8x256xf32>
    %6 = tpu.matmul %3, %5, %cst {dimension_numbers = #tpu.dot_dimension_numbers<[1], [0], [0], [1], [0, 0, 1, 1], [], []>} : vector<8x4xbf16>, vector<4x256xbf16>, vector<8x256xf32> -> vector<8x256xf32>
    %c0_5 = arith.constant 0 : index
    %c0_6 = arith.constant 0 : index
    %7 = vector.load %arg5[%c0_5, %c0_6] : memref<8x1xf32, #tpu.memory_space<vmem>>, vector<8x1xf32>
    %8 = vector.broadcast %7 : vector<8x1xf32> to vector<8x256xf32>
    %9 = arith.addf %6, %8 : vector<8x256xf32>
    %cst_7 = arith.constant 0.000000e+00 : f32
    %10 = vector.broadcast %cst_7 : f32 to vector<8x256xf32>
    %11 = arith.maximumf %9, %10 : vector<8x256xf32>
    %c0_8 = arith.constant 0 : index
    %c0_9 = arith.constant 0 : index
    %12 = vector.load %arg7[%c0_8, %c0_9] : memref<8x1xf32, #tpu.memory_space<vmem>>, vector<8x1xf32>
    %cst_10 = arith.constant dense<0.000000e+00> : vector<8xf32>
    %13 = vector.multi_reduction <add>, %11, %cst_10 [1] : vector<8x256xf32> to vector<8xf32>
    %14 = vector.shape_cast %13 : vector<8xf32> to vector<8x1xf32>
    %15 = arith.addf %12, %14 : vector<8x1xf32>
    %c0_11 = arith.constant 0 : index
    %c0_12 = arith.constant 0 : index
    %16 = vector.load %arg7[%c0_11, %c0_12] : memref<8x1xf32, #tpu.memory_space<vmem>>, vector<8x1xf32>
    tpu.vector_store %arg7[%c0_11, %c0_12], %15 {strides = array<i32>} : memref<8x1xf32, #tpu.memory_space<vmem>>, vector<8x1xf32>,
    %c0_i32_13 = arith.constant 0 : i32
    %17 = arith.cmpi eq, %arg2, %c0_i32_13 : i32
    %18 = arith.extui %17 : i1 to i32
    %c0_i32_14 = arith.constant 0 : i32
    %19 = arith.cmpi ne, %18, %c0_i32_14 : i32
    scf.if %19 {
      %c0_15 = arith.constant 0 : index
      %c0_16 = arith.constant 0 : index
      %20 = vector.load %arg7[%c0_15, %c0_16] : memref<8x1xf32, #tpu.memory_space<vmem>>, vector<8x1xf32>
      %c0_17 = arith.constant 0 : index
      %c0_18 = arith.constant 0 : index
      %c0_19 = arith.constant 0 : index
      %c0_20 = arith.constant 0 : index
      %21 = vector.load %arg6[%c0_17, %c0_18, %c0_19, %c0_20] : memref<1x1x8x1xf32, #tpu.memory_space<vmem>>, vector<1x1x8x1xf32>
      %22 = vector.shape_cast %21 : vector<1x1x8x1xf32> to vector<8x1xf32>
      %23 = vector.shape_cast %20 : vector<8x1xf32> to vector<1x1x8x1xf32>
      tpu.vector_store %arg6[%c0_17, %c0_18, %c0_19, %c0_20], %23 {strides = array<i32>} : memref<1x1x8x1xf32, #tpu.memory_space<vmem>>, vector<1x1x8x1xf32>,
    } else {
    }
    return
  }
  func.func @transform_0(%arg0: i32, %arg1: i32, %arg2: i32) -> (i32, i32, i32) {
    %c1_i32 = arith.constant 1 : i32
    %0 = arith.muli %arg1, %c1_i32 : i32
    %1 = arith.addi %0, %arg2 : i32
    %c0_i32 = arith.constant 0 : i32
    %c0_i32_0 = arith.constant 0 : i32
    return %arg0, %c0_i32, %1 : i32, i32, i32
  }
  func.func @transform_1(%arg0: i32, %arg1: i32, %arg2: i32) -> (i32, i32) {
    %c0_i32 = arith.constant 0 : i32
    %c0_i32_0 = arith.constant 0 : i32
    %c0_i32_1 = arith.constant 0 : i32
    return %c0_i32, %c0_i32_0 : i32, i32
  }
  func.func @transform_2(%arg0: i32, %arg1: i32, %arg2: i32) -> (i32, i32) {
    %c0_i32 = arith.constant 0 : i32
    %c0_i32_0 = arith.constant 0 : i32
    %c0_i32_1 = arith.constant 0 : i32
    return %c0_i32, %c0_i32_0 : i32, i32
  }
  func.func @transform_3(%arg0: i32, %arg1: i32, %arg2: i32) -> (i32, i32, i32, i32) {
    %c0_i32 = arith.constant 0 : i32
    %c0_i32_0 = arith.constant 0 : i32
    %c0_i32_1 = arith.constant 0 : i32
    return %arg0, %arg1, %c0_i32, %c0_i32_0 : i32, i32, i32, i32
  }
}

</mosaic_0001>

<llo_original>
// kernel: tpu_custom_call.1
$region0: #{tpu_custom_call.1}
  #allocation0 [shape = 'u32[]', space=smem, size = 0x4, offset = 0x4, fixed_abs, tag = 'smem constant byte address 0x4 - core index']
  #allocation1 [shape = 'u32[72,128]{1,0:T(1,128)}', space=vmem, size = 0x9000, scoped, tag = 'internal scratch']
  #allocation2 [shape = 'f32[8,1]{1,0:T(8,128)}', space=vmem, size = 0x1000, scoped, tag = 'scratch operand']
  %s0 = inlined_call_operand.vmem [shape: bf16[2,4,256], index: 0, kind: input, shape index: {}]
  %s1 = inlined_call_operand.vmem [shape: bf16[8,4], index: 1, kind: input, shape index: {}]
  %s2 = inlined_call_operand.vmem [shape: f32[8,1], index: 2, kind: input, shape index: {}]
  %s3 = inlined_call_operand.vmem [shape: f32[2,1,8,1], index: 3, kind: output, shape index: {}]
  %s4 = sld [smem:[#allocation0]]
  $region53: #{tpu_custom_call.1} parent=0
    _
  %s6 = ssub.s32 1, %s4
  %s7 = scalar_select 0, %s6, %s4
  loop: start=0, step=1, limit=4
  $region2: #{tpu_custom_call.1} parent=0 // loop_pre_header
    _
  $region3: #{tpu_custom_call.1} parent=0 // loop_header
    %s9 = sphi 0, %s13
    %p10 = scmp.ge.s32.totalorder %s9, 4
    %s16 = sphi 0, %s35
    %s17 = sphi 0, %s31
    %s18 = sphi 0, %s27
    %s19 = sphi 0, %s16
    %s20 = sphi 0, %s17
    %s21 = sphi 0, %s18
    %s22 = sphi 0, %s19
    %s23 = sphi 0, %s20
    %s24 = sphi 0, %s21
    %s42 = sphi 0, %s44
    %s45 = sphi 0, %s42
    %s46 = sphi 0, %s45
    %s62 = sphi 0, %s46
    %s66 = sphi 0, %s66
    %s68 = sphi 0, %s66
    %s69 = sphi 0, %s68
    %s83 = sphi 0, %s69
    %s87 = sphi 0, %s87
    %s89 = sphi 0, %s87
    %s90 = sphi 0, %s89
    %s104 = sphi 0, %s90
    %s112 = sphi 0, %s114
    %s115 = sphi 0, %s112
    %s116 = sphi 0, %s115
    %s132 = sphi 0, %s116
  $region4: #{tpu_custom_call.1} parent=0 // loop_header_branch
    %12 = sbr.rel (%p10) target = $region8
  $region5: #{tpu_custom_call.1} parent=0 // loop_body
    %s14 = ssub.s32 %s9, 1
    %s15 = ssub.s32 %s9, 2
    %s25 = sadd.s32 1, %s18
    %p26 = scmp.ge.s32.totalorder %s25, 1
    %s27 = scalar_select %p26, 0, %s25
    %s28 = sadd.s32 1, %s17
    %s29 = scalar_select %p26, %s28, %s17
    %p30 = scmp.ge.s32.totalorder %s29, 1
    %s31 = scalar_select %p30, 0, %s29
    %s32 = sadd.s32 1, %s16
    %s33 = scalar_select %p30, %s32, %s16
    %p34 = scmp.ge.s32.totalorder %s33, 2
    %s35 = scalar_select %p34, 0, %s33
    %s36 = sadd.s32 %s17, %s18
    %s37 = sadd.s32 %s31, %s27
    %s38 = ssub.s32 %s16, %s35
    %s39 = ssub.s32 %s36, %s37
    %s40 = sor.u32 %s38, %s39
    %p41 = scmp.eq.s32.totalorder %s40, 0
    %s43 = sadd.s32 %s42, 1
    %s44 = scalar_select %p41, %s42, %s43
    %p47 = pneg %p41
    %p48 = scmp.eq.s32.totalorder %s9, 1
    %p49 = por %p47, %p48
    %p50 = scmp.ne.s32.totalorder %s42, %s45
    %p51 = scmp.eq.s32.totalorder %s9, 0
    %p52 = por %p50, %p51
    %p53 = scmp.ne.s32.totalorder %s42, %s45
    %p54 = scmp.eq.s32.totalorder %s14, 1
    %p55 = por %p53, %p54
    %p56 = scmp.ne.s32.totalorder %s45, %s46
    %p57 = scmp.eq.s32.totalorder %s14, 0
    %p58 = por %p56, %p57
    %p59 = scmp.ne.s32.totalorder %s45, %s46
    %p60 = scmp.eq.s32.totalorder %s15, 1
    %p61 = por %p59, %p60
    %p63 = scmp.ne.s32.totalorder %s46, %s62
    %p64 = scmp.eq.s32.totalorder %s15, 0
    %p65 = por %p63, %p64
    %s67 = sadd.s32 %s66, 1
    %p70 = scmp.eq.s32.totalorder %s9, 1
    %p71 = scmp.ne.s32.totalorder %s66, %s68
    %p72 = scmp.eq.s32.totalorder %s9, 0
    %p73 = por %p71, %p72
    %p74 = scmp.ne.s32.totalorder %s66, %s68
    %p75 = scmp.eq.s32.totalorder %s14, 1
    %p76 = por %p74, %p75
    %p77 = scmp.ne.s32.totalorder %s68, %s69
    %p78 = scmp.eq.s32.totalorder %s14, 0
    %p79 = por %p77, %p78
    %p80 = scmp.ne.s32.totalorder %s68, %s69
    %p81 = scmp.eq.s32.totalorder %s15, 1
    %p82 = por %p80, %p81
    %p84 = scmp.ne.s32.totalorder %s69, %s83
    %p85 = scmp.eq.s32.totalorder %s15, 0
    %p86 = por %p84, %p85
    %s88 = sadd.s32 %s87, 1
    %p91 = scmp.eq.s32.totalorder %s9, 1
    %p92 = scmp.ne.s32.totalorder %s87, %s89
    %p93 = scmp.eq.s32.totalorder %s9, 0
    %p94 = por %p92, %p93
    %p95 = scmp.ne.s32.totalorder %s87, %s89
    %p96 = scmp.eq.s32.totalorder %s14, 1
    %p97 = por %p95, %p96
    %p98 = scmp.ne.s32.totalorder %s89, %s90
    %p99 = scmp.eq.s32.totalorder %s14, 0
    %p100 = por %p98, %p99
    %p101 = scmp.ne.s32.totalorder %s89, %s90
    %p102 = scmp.eq.s32.totalorder %s15, 1
    %p103 = por %p101, %p102
    %p105 = scmp.ne.s32.totalorder %s90, %s104
    %p106 = scmp.eq.s32.totalorder %s15, 0
    %p107 = por %p105, %p106
    %s108 = ssub.s32 %s16, %s35
    %s109 = ssub.s32 %s17, %s31
    %s110 = sor.u32 %s108, %s109
    %p111 = scmp.eq.s32.totalorder %s110, 0
    %s113 = sadd.s32 %s112, 1
    %s114 = scalar_select %p111, %s112, %s113
    %p117 = pneg %p111
    %p118 = scmp.eq.s32.totalorder %s9, 1
    %p119 = por %p117, %p118
    %p120 = scmp.ne.s32.totalorder %s112, %s115
    %p121 = scmp.eq.s32.totalorder %s9, 0
    %p122 = por %p120, %p121
    %p123 = scmp.ne.s32.totalorder %s112, %s115
    %p124 = scmp.eq.s32.totalorder %s14, 1
    %p125 = por %p123, %p124
    %p126 = scmp.ne.s32.totalorder %s115, %s116
    %p127 = scmp.eq.s32.totalorder %s14, 0
    %p128 = por %p126, %p127
    %p129 = scmp.ne.s32.totalorder %s115, %s116
    %p130 = scmp.eq.s32.totalorder %s15, 1
    %p131 = por %p129, %p130
    %p133 = scmp.ne.s32.totalorder %s116, %s132
    %p134 = scmp.eq.s32.totalorder %s15, 0
    %p135 = por %p133, %p134
    %p136 = scmp.le.s32.totalorder 1, %s9
    %p137 = scmp.lt.s32.totalorder %s9, 3
    %p138 = pnand %p136, %p137
    %p139 = pneg %p138
    // Predicated region
    $region9: #{tpu_custom_call.1} parent=5 // pred_check
      _
    $region10: #{tpu_custom_call.1} parent=5 // pred_check_branch
      %141 = sbr.rel (%p138) target = $region12
    $region11: #{tpu_custom_call.1} parent=5 // pred_region
      %s142 = ssub.s32 %s9, 1
      // Predicated region
      $region13: #{tpu_custom_call.1} parent=11 // pred_check
        %p143 = pneg %p79
      $region14: #{tpu_custom_call.1} parent=11 // pred_check_branch
        %145 = sbr.rel (%p143) target = $region16
      $region15: #{tpu_custom_call.1} parent=11 // pred_region
        _
      $region16: #{tpu_custom_call.1} parent=11 // pred_fallthru
        _
      // Predicated region
      $region17: #{tpu_custom_call.1} parent=11 // pred_check
        %p146 = pneg %p100
      $region18: #{tpu_custom_call.1} parent=11 // pred_check_branch
        %148 = sbr.rel (%p146) target = $region20
      $region19: #{tpu_custom_call.1} parent=11 // pred_region
        _
      $region20: #{tpu_custom_call.1} parent=11 // pred_fallthru
        _
    $region12: #{tpu_custom_call.1} parent=5 // pred_fallthru
      _
    %p149 = scmp.lt.s32.totalorder %s9, 2
    // Predicated region
    $region21: #{tpu_custom_call.1} parent=5 // pred_check
      %p150 = pneg %p149
    $region22: #{tpu_custom_call.1} parent=5 // pred_check_branch
      %152 = sbr.rel (%p150) target = $region24
    $region23: #{tpu_custom_call.1} parent=5 // pred_region
      // Predicated region
      $region25: #{tpu_custom_call.1} parent=23 // pred_check
        %p153 = pneg %p52
      $region26: #{tpu_custom_call.1} parent=23 // pred_check_branch
        %155 = sbr.rel (%p153) target = $region28
      $region27: #{tpu_custom_call.1} parent=23 // pred_region
        %s156 = sadd.s32 %s17, %s18
        %s157 = smul.u32 2, %s156
        %p158 = scmp.lt.s32.totalorder %s16, 1
        %s159 = scalar_select %p158, %s16, 1
        %p160 = scmp.lt.s32.totalorder %s157, 1
        %s161 = scalar_select %p160, %s157, 1
        %s162 = smul.addr %s159, 2
        %s163 = sadd.s32 %s161, %s162
        %s164 = smul.addr %s163, 2
        %s165 = scalar_lea.vmem %s0, %s164
        %s166 = sadd.s32 %s17, %s18
        %s167 = smul.u32 2, %s166
      $region28: #{tpu_custom_call.1} parent=23 // pred_fallthru
        _
    $region24: #{tpu_custom_call.1} parent=5 // pred_fallthru
      _
    %p168 = scmp.le.s32.totalorder 1, %s9
    %p169 = scmp.lt.s32.totalorder %s9, 3
    %p170 = pnand %p168, %p169
    %p171 = pneg %p170
    // Predicated region
    $region29: #{tpu_custom_call.1} parent=5 // pred_check
      _
    $region30: #{tpu_custom_call.1} parent=5 // pred_check_branch
      %173 = sbr.rel (%p170) target = $region32
    $region31: #{tpu_custom_call.1} parent=5 // pred_region
      %s174 = ssub.s32 %s9, 1
      %s175 = sadd.s32 %s20, %s21
      %s176 = smul.u32 2, %s175
      %p177 = scmp.lt.s32.totalorder %s19, 1
      %s178 = scalar_select %p177, %s19, 1
      %p179 = scmp.lt.s32.totalorder %s176, 1
      %s180 = scalar_select %p179, %s176, 1
      %s181 = smul.addr %s178, 2
      %s182 = sadd.s32 %s180, %s181
      %s183 = smul.addr %s182, 2
      %s184 = scalar_lea.vmem %s0, %s183
      %p185 = pneg %p58
      %p186 = pneg %p55
      %p187 = pneg %p79
      %p188 = pneg %p76
      %p189 = pneg %p100
      %p190 = pneg %p97
      %p191 = pneg %p128
      %p192 = pneg %p125
      %p193 = scmp.lt.s32.totalorder %s19, 1
      %s194 = scalar_select %p193, %s19, 1
      %p195 = scmp.lt.s32.totalorder %s20, 0
      %s196 = scalar_select %p195, %s20, 0
      %s197 = sadd.s32 %s196, %s194
      %s198 = smul.addr %s197, 8
      %s199 = scalar_lea.vmem %s3, %s198
      %s200 = sadd.s32 %s20, %s21
      %s201 = smul.u32 2, %s200
      %p202 = scmp.lt.s32.totalorder %s19, 1
      %s203 = scalar_select %p202, %s19, 1
      %p204 = scmp.lt.s32.totalorder %s201, 1
      %s205 = scalar_select %p204, %s201, 1
      %s206 = smul.addr %s203, 2
      %s207 = sadd.s32 %s205, %s206
      %s208 = smul.addr %s207, 2
      %s209 = scalar_lea.vmem %s0, %s208
      %s210 = sadd.s32 %s20, %s21
      %s211 = smul.u32 2, %s210
      %p212 = scmp.lt.s32.totalorder %s19, 1
      %s213 = scalar_select %p212, %s19, 1
      %p214 = scmp.lt.s32.totalorder %s20, 0
      %s215 = scalar_select %p214, %s20, 0
      %s216 = sadd.s32 %s215, %s213
      %s217 = smul.addr %s216, 8
      %s218 = scalar_lea.vmem %s3, %s217
      %p220 = scmp.eq.s32.totalorder %s21, 0
      // Predicated region
      $region33: #{tpu_custom_call.1} parent=31 // pred_check
        %p221 = pneg %p220
      $region34: #{tpu_custom_call.1} parent=31 // pred_check_branch
        %223 = sbr.rel (%p221) target = $region36
      $region35: #{tpu_custom_call.1} parent=31 // pred_region
        %vm224 = vcmask 7168
        %225 = vst.msk [vmem:[#allocation2] sm:$0xff] %vm224, 0.0
      $region36: #{tpu_custom_call.1} parent=31 // pred_fallthru
        _
      %v226 = vld [vmem:[%s1] sm:$0xf]
      %v227 = vld [vmem:[%s209] sm:$0xf]
      %v228 = vld [vmem:[%s2] sm:$0xff]
      %230 = vset.pattern.permute.xlu0 0
      %231 = vperm.xlu0 %230, %v228
      %v232 = vpop.permute.xlu0 %231
      %235 = vst [vmem:[#allocation1] ss:$4 sm:$0xff] %v227
      %v236 = vld.sshfl [vmem:[#allocation1] sm:$0xff pattern:$0x73625140]
      %v237 = vld.sshfl [vmem:[#allocation1 + $0x8] sm:$0xff pattern:$0x73625140]
      %vm238 = vcmask 31744
      %v240 = vsel %vm238, %v226, 0
      %vm242 = vcmask 1041408
      %v243 = vsel %vm242, %v236, 0
      %v245 = vsel %vm242, %v237, 0
      %247 = vmatpush.bf16.msra.mxu0 0
      %248 = vmatpush.bf16.msra.mxu0 0
      %249 = vmatpush.bf16.msra.mxu0 0
      %250 = vmatpush.bf16.msra.mxu0 0
      %251 = vmatpush.bf16.msra.mxu0 0
      %252 = vmatpush.bf16.msra.mxu0 0
      %253 = vmatpush.bf16.msra.mxu0 0
      %254 = vmatpush.bf16.msra.mxu0 %v243
      %255 = vmatmul.bf16.gmra.mxu0 %v240
      %v256 = vpop.f32.mrf.mxu0
      %v257 = vadd.f32 %v232, %v256
      %v258 = vpop.f32.mrf.mxu0
      %259 = vdwg.mxu0
      %260 = vmatpush.bf16.msra.mxu0 0
      %261 = vmatpush.bf16.msra.mxu0 0
      %262 = vmatpush.bf16.msra.mxu0 0
      %263 = vmatpush.bf16.msra.mxu0 0
      %264 = vmatpush.bf16.msra.mxu0 0
      %265 = vmatpush.bf16.msra.mxu0 0
      %266 = vmatpush.bf16.msra.mxu0 0
      %267 = vmatpush.bf16.msra.mxu0 %v245
      %268 = vmatmul.bf16.gmra.mxu0 %v240
      %v269 = vpop.f32.mrf.mxu0
      %v270 = vadd.f32 %v232, %v269
      %v271 = vpop.f32.mrf.mxu0
      %272 = vdwg.mxu0
      %v273 = vmax.f32 %v257, 0.0
      %v274 = vmax.f32 %v270, 0.0
      %v275 = vld [vmem:[#allocation2] sm:$0xff]
      %v276 = vadd.f32 %v273, %v274
      %277 = vadd.xlane.f32.xlu0 %v276
      %v278 = vpop.xlane.xlu0 %277
      %v279 = vadd.f32 %v275, %v278
      %vm280 = vcmask 7168
      %281 = vst.msk [vmem:[#allocation2] sm:$0xff] %vm280, %v279
      // Predicated region
      $region37: #{tpu_custom_call.1} parent=31 // pred_check
        %p282 = pneg %p220
      $region38: #{tpu_custom_call.1} parent=31 // pred_check_branch
        %284 = sbr.rel (%p282) target = $region40
      $region39: #{tpu_custom_call.1} parent=31 // pred_region
        %v285 = vld [vmem:[#allocation2] sm:$0xff]
        %286 = vst.msk [vmem:[%s218] sm:$0xff] %vm280, %v285
      $region40: #{tpu_custom_call.1} parent=31 // pred_fallthru
        _
      %p287 = scmp.lt.s32.totalorder %s19, 1
      %s288 = scalar_select %p287, %s19, 1
      %p289 = scmp.lt.s32.totalorder %s20, 0
      %s290 = scalar_select %p289, %s20, 0
      %s291 = sadd.s32 %s290, %s288
      %s292 = smul.addr %s291, 8
      %s293 = scalar_lea.vmem %s3, %s292
      // Predicated region
      $region41: #{tpu_custom_call.1} parent=31 // pred_check
        %p294 = pneg %p125
      $region42: #{tpu_custom_call.1} parent=31 // pred_check_branch
        %296 = sbr.rel (%p294) target = $region44
      $region43: #{tpu_custom_call.1} parent=31 // pred_region
        _
      $region44: #{tpu_custom_call.1} parent=31 // pred_fallthru
        _
    $region32: #{tpu_custom_call.1} parent=5 // pred_fallthru
      _
    %p297 = scmp.le.s32.totalorder 2, %s9
    // Predicated region
    $region45: #{tpu_custom_call.1} parent=5 // pred_check
      %p298 = pneg %p297
    $region46: #{tpu_custom_call.1} parent=5 // pred_check_branch
      %300 = sbr.rel (%p298) target = $region48
    $region47: #{tpu_custom_call.1} parent=5 // pred_region
      %s301 = ssub.s32 %s9, 2
      // Predicated region
      $region49: #{tpu_custom_call.1} parent=47 // pred_check
        %p302 = pneg %p131
      $region50: #{tpu_custom_call.1} parent=47 // pred_check_branch
        %304 = sbr.rel (%p302) target = $region52
      $region51: #{tpu_custom_call.1} parent=47 // pred_region
        %p305 = scmp.lt.s32.totalorder %s22, 1
        %s306 = scalar_select %p305, %s22, 1
        %p307 = scmp.lt.s32.totalorder %s23, 0
        %s308 = scalar_select %p307, %s23, 0
        %s309 = sadd.s32 %s308, %s306
        %s310 = smul.addr %s309, 8
        %s311 = scalar_lea.vmem %s3, %s310
      $region52: #{tpu_custom_call.1} parent=47 // pred_fallthru
        _
    $region48: #{tpu_custom_call.1} parent=5 // pred_fallthru
      _
  $region6: #{tpu_custom_call.1} parent=0 // loop_footer
    %s13 = sadd.s32 1, %s9
  $region7: #{tpu_custom_call.1} parent=0 // loop_footer_branch
    %8 = sbr.rel target = $region3
  $region8: #{tpu_custom_call.1} parent=0 // loop_exit
    _

</llo_original>
